<compile_context>
chip_gen: v7x
topology: tpu7x:2x2x1
jax: 0.10.0
libtpu: 0.0.40
codegen_flags: <defaults>
</compile_context>

<pallas_src>
import jax
import jax.numpy as jnp
from jax import lax
from jax.experimental import pallas as pl
from jax.experimental.pallas import tpu as pltpu


def _proposal_mean_kernel(x_ref, w_ref, p_ref, mean_ref):
    # x_ref: (TILE_B, d_out) tile   w_ref: (d_out, d_out) resident weight
    # p_ref: (2, d_out) resident [mu; beta]
    # MXU: x @ W^T expressed as a contraction on dim 1 of both operands,
    # so the wrapper never materializes W.T.
    y = lax.dot_general(
        x_ref[...], w_ref[...],
        dimension_numbers=(((1,), (1,)), ((), ())),
        preferred_element_type=jnp.float32)
    p = p_ref[...]
    mu = p[0:1, :]        # (1, d_out) -> broadcast over batch sublanes
    beta = p[1:2, :]
    mean_ref[...] = (mu + beta * y).astype(mean_ref.dtype)


def _pick_tile_b(batch, max_tile=512):
    # Single block (block dim == array dim) is always legal; otherwise use a
    # 512-row tile (multiple of 8 sublanes, ~85% of HBM roofline sweet spot).
    return batch if batch <= max_tile else max_tile


def scaled_linear_proposal(x, W, mu_t, beta_t, tau_t, d_out):
    """Returns (mean, var) matching ScaledLinearProposal.forward.

    x:      (batch, d_in) float32
    W:      (d_out, d_out) float32   -- nn.Linear weight (out_features, in_features)
    mu_t, beta_t, tau_t: (d_out,) float32
    """
    batch = x.shape[0]
    x_sl = x[:, :d_out]                            # slice like x[:, :d_out]
    params = jnp.stack([mu_t, beta_t], axis=0)     # (2, d_out) packed block

    tile_b = _pick_tile_b(batch)
    grid = (pl.cdiv(batch, tile_b),)

    mean = pl.pallas_call(
        _proposal_mean_kernel,
        out_shape=jax.ShapeDtypeStruct((batch, d_out), jnp.float32),
        grid=grid,
        in_specs=[
            pl.BlockSpec((tile_b, d_out), lambda i: (i, 0)),   # pipelined x tile
            pl.BlockSpec((d_out, d_out), lambda i: (0, 0)),    # resident weight
            pl.BlockSpec((2, d_out), lambda i: (0, 0)),        # resident [mu; beta]
        ],
        out_specs=pl.BlockSpec((tile_b, d_out), lambda i: (i, 0)),
        compiler_params=pltpu.CompilerParams(
            dimension_semantics=("parallel",)),
    )(x_sl, W, params)

    # log_flag=True branch: var = log(1 + exp(tau)); batch-independent and
    # tiny, so it stays in the wrapper with a numerically stable softplus.
    var = jax.nn.softplus(tau_t)
    return mean, var


def _ref_forward(x, W, mu_t, beta_t, tau_t, d_out):
    mean = mu_t + beta_t * (x[:, :d_out] @ W.T)
    var = jax.nn.softplus(tau_t)
    return mean, var


if __name__ == "__main__":
    d_in, d_out = 48, 32

    key = jax.random.PRNGKey(0)
    kx, kw, kmu, kbeta, ktau, kx2 = jax.random.split(key, 6)

    # Module-consistent parameter shapes:
    #   A.weight: (d_out, d_out), bias_flag=False -> no bias
    #   tau_t, beta_t, mu_t: (d_out,)
    W = jax.random.normal(kw, (d_out, d_out), dtype=jnp.float32) * 0.1
    mu_t = jax.random.normal(kmu, (d_out,), dtype=jnp.float32) * 0.05
    beta_t = jax.random.normal(kbeta, (d_out,), dtype=jnp.float32) * 0.5
    tau_t = jax.random.normal(ktau, (d_out,), dtype=jnp.float32) * 0.3

    # 1) Small batch (single block, grid == 1).
    batch = 8
    x = jax.random.normal(kx, (batch, d_in), dtype=jnp.float32)
    mean, var = jax.block_until_ready(
        scaled_linear_proposal(x, W, mu_t, beta_t, tau_t, d_out))
    mean_ref, var_ref = _ref_forward(x, W, mu_t, beta_t, tau_t, d_out)
    assert mean.shape == (batch, d_out) and var.shape == (d_out,)
    assert jnp.allclose(mean, mean_ref, atol=1e-5, rtol=1e-5)
    assert jnp.allclose(var, var_ref, atol=1e-5, rtol=1e-5)

    # 2) Larger batch to exercise the tiled/pipelined path (grid > 1 with a
    #    partial final block).
    batch2 = 1040                       # 512 + 512 + 16
    x2 = jax.random.normal(kx2, (batch2, d_in), dtype=jnp.float32)
    mean2, var2 = jax.block_until_ready(
        scaled_linear_proposal(x2, W, mu_t, beta_t, tau_t, d_out))
    mean2_ref, _ = _ref_forward(x2, W, mu_t, beta_t, tau_t, d_out)
    assert mean2.shape == (batch2, d_out)
    assert jnp.allclose(mean2, mean2_ref, atol=1e-5, rtol=1e-5)
    assert jnp.allclose(var2, var_ref, atol=1e-5, rtol=1e-5)

    print("KERNEL_OK")
</pallas_src>

<mosaic_0001>
module attributes {stable_mosaic.version = 11 : i64} {
  func.func @_proposal_mean_kernel(%arg0: i32, %arg1: memref<8x32xf32, #tpu.memory_space<vmem>>, %arg2: memref<32x32xf32, #tpu.memory_space<vmem>>, %arg3: memref<2x32xf32, #tpu.memory_space<vmem>>, %arg4: memref<8x32xf32, #tpu.memory_space<vmem>>) attributes {dimension_semantics = [#tpu.dimension_semantics<parallel>], iteration_bounds = array<i64: 1>, scalar_prefetch = 0 : i64, scratch_operands = 0 : i64, tpu.core_type = #tpu.core_type<tc>, window_params = [{transform_indices = @transform_0, window_bounds = array<i64: 8, 32>}, {pipeline_mode = #tpu.pipeline_mode<synchronous>, transform_indices = @transform_1, window_bounds = array<i64: 32, 32>}, {pipeline_mode = #tpu.pipeline_mode<synchronous>, transform_indices = @transform_2, window_bounds = array<i64: 2, 32>}, {transform_indices = @transform_3, window_bounds = array<i64: 8, 32>}]} {
    %c0 = arith.constant 0 : index
    %c0_0 = arith.constant 0 : index
    %0 = vector.load %arg1[%c0, %c0_0] : memref<8x32xf32, #tpu.memory_space<vmem>>, vector<8x32xf32>
    %c0_1 = arith.constant 0 : index
    %c0_2 = arith.constant 0 : index
    %1 = vector.load %arg2[%c0_1, %c0_2] : memref<32x32xf32, #tpu.memory_space<vmem>>, vector<32x32xf32>
    %cst = arith.constant dense<0.000000e+00> : vector<8x32xf32>
    %2 = tpu.matmul %0, %1, %cst {dimension_numbers = #tpu.dot_dimension_numbers<[1], [1], [0], [0], [0, 0, 1, 0], [], []>} : vector<8x32xf32>, vector<32x32xf32>, vector<8x32xf32> -> vector<8x32xf32>
    %c0_3 = arith.constant 0 : index
    %c0_4 = arith.constant 0 : index
    %3 = vector.load %arg3[%c0_3, %c0_4] : memref<2x32xf32, #tpu.memory_space<vmem>>, vector<2x32xf32>
    %4 = vector.extract_strided_slice %3 {offsets = [0, 0], sizes = [1, 32], strides = [1, 1]} : vector<2x32xf32> to vector<1x32xf32>
    %5 = vector.extract_strided_slice %3 {offsets = [1, 0], sizes = [1, 32], strides = [1, 1]} : vector<2x32xf32> to vector<1x32xf32>
    %6 = vector.broadcast %5 : vector<1x32xf32> to vector<8x32xf32>
    %7 = arith.mulf %6, %2 : vector<8x32xf32>
    %8 = vector.broadcast %4 : vector<1x32xf32> to vector<8x32xf32>
    %9 = arith.addf %8, %7 : vector<8x32xf32>
    %c0_5 = arith.constant 0 : index
    %c0_6 = arith.constant 0 : index
    %10 = vector.load %arg4[%c0_5, %c0_6] : memref<8x32xf32, #tpu.memory_space<vmem>>, vector<8x32xf32>
    tpu.vector_store %arg4[%c0_5, %c0_6], %9 {strides = array<i32>} : memref<8x32xf32, #tpu.memory_space<vmem>>, vector<8x32xf32>,
    return
  }
  func.func @transform_0(%arg0: i32) -> (i32, i32) {
    %c0_i32 = arith.constant 0 : i32
    %c0_i32_0 = arith.constant 0 : i32
    return %arg0, %c0_i32 : i32, i32
  }
  func.func @transform_1(%arg0: i32) -> (i32, i32) {
    %c0_i32 = arith.constant 0 : i32
    %c0_i32_0 = arith.constant 0 : i32
    %c0_i32_1 = arith.constant 0 : i32
    return %c0_i32, %c0_i32_0 : i32, i32
  }
  func.func @transform_2(%arg0: i32) -> (i32, i32) {
    %c0_i32 = arith.constant 0 : i32
    %c0_i32_0 = arith.constant 0 : i32
    %c0_i32_1 = arith.constant 0 : i32
    return %c0_i32, %c0_i32_0 : i32, i32
  }
  func.func @transform_3(%arg0: i32) -> (i32, i32) {
    %c0_i32 = arith.constant 0 : i32
    %c0_i32_0 = arith.constant 0 : i32
    return %arg0, %c0_i32 : i32, i32
  }
}

</mosaic_0001>

<llo_original>
// kernel: tpu_custom_call.1
$region0: #{tpu_custom_call.1}
  #allocation0 [shape = 'u32[]', space=smem, size = 0x4, offset = 0x4, fixed_abs, tag = 'smem constant byte address 0x4 - core index']
  #allocation1 [shape = 'u32[144,128]{1,0:T(1,128)}', space=vmem, size = 0x12000, scoped, tag = 'internal scratch']
  %s0 = inlined_call_operand.hbm [shape: f32[8,32], index: 0, kind: input, shape index: {}]
  %s1 = inlined_call_operand.hbm [shape: f32[32,32], index: 1, kind: input, shape index: {}]
  %s2 = inlined_call_operand.vmem [shape: f32[2,32], index: 2, kind: input, shape index: {}]
  %s3 = inlined_call_operand.hbm [shape: f32[8,32], index: 3, kind: output, shape index: {}]
  %s4 = sld [smem:[#allocation0]]
  $region30: #{tpu_custom_call.1} parent=0
    _
  %s6 = ssub.s32 1, %s4
  %s7 = scalar_select 0, %s6, %s4
  $region1: #{tpu_custom_call.1} parent=0
    #allocation2 [shape = 'u8[4096]{0}', space=vmem, size = 0x1000, scoped, tag = 'input window, operand 0, single buffered']
    #allocation3 [shape = 's32[1]{0}', space=sflag, size = 0x4, scoped, tag = 'scoped memory for tpu_custom_call.1']
    #allocation4 [shape = 's32[1]{0}', space=sflag, size = 0x4, scoped, tag = 'scoped memory for tpu_custom_call.1']
    #allocation5 [shape = 'u8[16384]{0}', space=vmem, size = 0x4000, scoped, tag = 'input window, operand 1, single buffered']
    #allocation6 [shape = 's32[1]{0}', space=sflag, size = 0x4, scoped, tag = 'scoped memory for tpu_custom_call.1']
    #allocation7 [shape = 'u8[4096]{0}', space=vmem, size = 0x1000, scoped, tag = 'output window, operand 0, single buffered']
    %8 = vsyncpa [#allocation3], 0
    %9 = vsyncpa [#allocation6], 0
    %10 = vsyncpa [#allocation4], 0
    // Predicated region
    $region2: #{tpu_custom_call.1} parent=1 // pred_check
      _
    $region3: #{tpu_custom_call.1} parent=1 // pred_check_branch
      %12 = sbr.rel (0) target = $region5
    $region4: #{tpu_custom_call.1} parent=1 // pred_region
      %s14 = ssub.s32 128, 128
      %15 = vsyncadd [#allocation3], %s14
      %s17 = sshll.u32 [#allocation2], 4
      %s18 = int_to_ptr.vmem [resolvable:$true] %s17
      %20 = dma.hbm_to_vmem [thread:$0]  %s0, 128, %s18, [#allocation3]
    $region5: #{tpu_custom_call.1} parent=1 // pred_fallthru
      _
    // Predicated region
    $region6: #{tpu_custom_call.1} parent=1 // pred_check
      _
    $region7: #{tpu_custom_call.1} parent=1 // pred_check_branch
      %22 = sbr.rel (0) target = $region9
    $region8: #{tpu_custom_call.1} parent=1 // pred_region
      %s24 = ssub.s32 512, 512
      %25 = vsyncadd [#allocation6], %s24
      %s26 = sshll.u32 [#allocation5], 4
      %s27 = int_to_ptr.vmem [resolvable:$true] %s26
      %32 = dma.hbm_to_vmem [thread:$0]  %s1, 512, %s27, [#allocation6], 128, 128, 8
    $region9: #{tpu_custom_call.1} parent=1 // pred_fallthru
      _
    // Predicated region
    $region10: #{tpu_custom_call.1} parent=1 // pred_check
      _
    $region11: #{tpu_custom_call.1} parent=1 // pred_check_branch
      %34 = sbr.rel (0) target = $region13
    $region12: #{tpu_custom_call.1} parent=1 // pred_region
      _
    $region13: #{tpu_custom_call.1} parent=1 // pred_fallthru
      _
    // Predicated region
    $region14: #{tpu_custom_call.1} parent=1 // pred_check
      _
    $region15: #{tpu_custom_call.1} parent=1 // pred_check_branch
      %36 = sbr.rel (0) target = $region17
    $region16: #{tpu_custom_call.1} parent=1 // pred_region
      %37 = dma.done [#allocation3], 128
    $region17: #{tpu_custom_call.1} parent=1 // pred_fallthru
      _
    // Predicated region
    $region18: #{tpu_custom_call.1} parent=1 // pred_check
      _
    $region19: #{tpu_custom_call.1} parent=1 // pred_check_branch
      %39 = sbr.rel (0) target = $region21
    $region20: #{tpu_custom_call.1} parent=1 // pred_region
      %40 = dma.done [#allocation6], 512
    $region21: #{tpu_custom_call.1} parent=1 // pred_fallthru
      _
    %v41 = vld [vmem:[#allocation2] sm:$0xff]
    %v42 = vld [vmem:[#allocation5] sm:$0xff]
    %v43 = vld [vmem:[#allocation5 + $0x8] sm:$0xff]
    %v44 = vld [vmem:[#allocation5 + $0x10] sm:$0xff]
    %v45 = vld [vmem:[#allocation5 + $0x18] sm:$0xff]
    %vm46 = vcmask 261120
    %v48 = vsel %vm46, %v41, 0
    %v51 = vsel %vm46, %v42, 0
    %v54 = vsel %vm46, %v43, 0
    %v57 = vsel %vm46, %v44, 0
    %v60 = vsel %vm46, %v45, 0
    %62 = vmatprep.subr.mxu0 0.0
    %63 = vmatpush1.xpose.msra.mxu0 %v51
    %64 = vmatprep.subr.mxu0 0.0
    %65 = vmatpush1.xpose.msra.mxu0 %v54
    %66 = vmatprep.subr.mxu0 0.0
    %67 = vmatpush1.xpose.msra.mxu0 %v57
    %68 = vmatprep.subr.mxu0 0.0
    %69 = vmatpush1.xpose.msra.mxu0 %v60
    %70 = vmatprep.subr.mxu0 0.0
    %71 = vmatpush1.xpose.msra.mxu0 0.0
    %72 = vmatprep.subr.mxu0 0.0
    %73 = vmatpush1.xpose.msra.mxu0 0.0
    %74 = vmatprep.subr.mxu0 0.0
    %75 = vmatpush1.xpose.msra.mxu0 0.0
    %76 = vmatprep.subr.mxu0 0.0
    %77 = vmatpush1.xpose.msra.mxu0 0.0
    %78 = vmatprep.subr.mxu0 0.0
    %79 = vmatpush1.xpose.msra.mxu0 0.0
    %80 = vmatprep.subr.mxu0 0.0
    %81 = vmatpush1.xpose.msra.mxu0 0.0
    %82 = vmatprep.subr.mxu0 0.0
    %83 = vmatpush1.xpose.msra.mxu0 0.0
    %84 = vmatprep.subr.mxu0 0.0
    %85 = vmatpush1.xpose.msra.mxu0 0.0
    %86 = vmatprep.subr.mxu0 0.0
    %87 = vmatpush1.xpose.msra.mxu0 0.0
    %88 = vmatprep.subr.mxu0 0.0
    %89 = vmatpush1.xpose.msra.mxu0 0.0
    %90 = vmatprep.subr.mxu0 0.0
    %91 = vmatpush1.xpose.msra.mxu0 0.0
    %92 = vmatprep.subr.mxu0 0.0
    %93 = vmatpush1.xpose.msra.mxu0 0.0
    %94 = vmatprep.subr.mxu0 0.0
    %95 = vmatpush1.xpose.msra.mxu0 0.0
    %96 = vmatprep.subr.mxu0 0.0
    %97 = vmatpush1.xpose.msra.mxu0 0.0
    %98 = vmatprep.subr.mxu0 0.0
    %99 = vmatpush1.xpose.msra.mxu0 0.0
    %100 = vmatprep.subr.mxu0 0.0
    %101 = vmatpush1.xpose.msra.mxu0 0.0
    %102 = vmatprep.subr.mxu0 0.0
    %103 = vmatpush1.xpose.msra.mxu0 0.0
    %104 = vmatprep.subr.mxu0 0.0
    %105 = vmatpush1.xpose.msra.mxu0 0.0
    %106 = vmatprep.subr.mxu0 0.0
    %107 = vmatpush1.xpose.msra.mxu0 0.0
    %108 = vmatprep.subr.mxu0 0.0
    %109 = vmatpush1.xpose.msra.mxu0 0.0
    %110 = vmatprep.subr.mxu0 0.0
    %111 = vmatpush1.xpose.msra.mxu0 0.0
    %112 = vmatprep.subr.mxu0 0.0
    %113 = vmatpush1.xpose.msra.mxu0 0.0
    %114 = vmatprep.subr.mxu0 0.0
    %115 = vmatpush1.xpose.msra.mxu0 0.0
    %116 = vmatprep.subr.mxu0 0.0
    %117 = vmatpush1.xpose.msra.mxu0 0.0
    %118 = vmatprep.subr.mxu0 0.0
    %119 = vmatpush1.xpose.msra.mxu0 0.0
    %120 = vmatprep.subr.mxu0 0.0
    %121 = vmatpush1.xpose.msra.mxu0 0.0
    %122 = vmatprep.subr.mxu0 0.0
    %123 = vmatpush1.xpose.msra.mxu0 0.0
    %124 = vmatprep.subr.mxu0 0.0
    %125 = vmatpush1.xpose.msra.mxu0 0.0
    %126 = vmatprep.mubr.f32.mxu0 0.0
    %127 = vmatmul.mubr.f32.gmra.mrb[0].mxu0 %v48
    %v128 = vpop.f32.mrb[0].mxu0
    %v129 = vadd.f32 0.0, %v128
    %v130 = vpop.f32.mrb[0].mxu0
    %131 = vdwg.mxu0
    %v132 = vld [vmem:[%s2] sm:$0x3]
    %v133 = vlaneseq
    %v134 = vshrl.u32 %v133, 7
    %v135 = vsub.s32 1, %v134
    %v136 = vrot.slane %v132, %v135
    %v137 = vmul.f32 %v136, %v129
    %v138 = vlaneseq
    %v139 = vshrl.u32 %v138, 7
    %v140 = vsub.s32 0, %v139
    %v141 = vrot.slane %v132, %v140
    %v142 = vadd.f32 %v141, %v137
    %143 = vst.msk [vmem:[#allocation7] sm:$0xff] %vm46, %v142
    // Predicated region
    $region22: #{tpu_custom_call.1} parent=1 // pred_check
      _
    $region23: #{tpu_custom_call.1} parent=1 // pred_check_branch
      %145 = sbr.rel (0) target = $region25
    $region24: #{tpu_custom_call.1} parent=1 // pred_region
      %s147 = ssub.s32 128, 128
      %148 = vsyncadd [#allocation4], %s147
      %s150 = sshll.u32 [#allocation7], 4
      %s151 = int_to_ptr.vmem [resolvable:$true] %s150
      %153 = dma.vmem_to_hbm [thread:$0]  %s151, 128, %s3, [#allocation4]
    $region25: #{tpu_custom_call.1} parent=1 // pred_fallthru
      _
    // Predicated region
    $region26: #{tpu_custom_call.1} parent=1 // pred_check
      _
    $region27: #{tpu_custom_call.1} parent=1 // pred_check_branch
      %155 = sbr.rel (0) target = $region29
    $region28: #{tpu_custom_call.1} parent=1 // pred_region
      %156 = dma.done [#allocation4], 128
    $region29: #{tpu_custom_call.1} parent=1 // pred_fallthru
      _
    %157 = vsyncpa [#allocation3], 1
    %158 = vsyncpa [#allocation6], 1
    %159 = vsyncpa [#allocation4], 1

</llo_original>
